<compile_context>
chip_gen: v6e
topology: v6e:2x2x1
jax: 0.10.0
libtpu: 0.0.40
codegen_flags: <defaults>
</compile_context>

<pallas_src>
import functools

import jax
import jax.numpy as jnp
from jax import lax
from jax.experimental import pallas as pl
from jax.experimental.pallas import tpu as pltpu


def _round_up(x, m):
    return (x + m - 1) // m * m


def _conv_same_pad_kernel(x_ref, w_ref, b_ref, o_ref, slab_ref, *,
                          n, cin, kh_size, kw_size, wp, l_img):
    """Single grid step over the whole (small) batch.

    x_ref:    (N, Cin, Lin)         Lin = Hp2*Wp; padded image flattened onto lanes
    w_ref:    (Cout, KH*KW*Cin)     bf16, column order (kh, kw, cin)
    b_ref:    (Cout, 1)             f32
    o_ref:    (N, Cout, L_img)      L_img = round_up(Ho*Wp, 128)  (lane-dense)
    slab_ref: (KH*KW*Cin, N*L_img)  bf16 VMEM im2col slab scratch
    """
    # Build the im2col slab: each tap is a static lane shift of the flattened
    # image (XLU-side work), written straight into its row/lane block of the
    # scratch -- no concatenate, no intermediate copy.
    for b in range(n):
        xb = x_ref[b]                                            # (Cin, Lin)
        for t_kh in range(kh_size):
            for t_kw in range(kw_size):
                t = t_kh * kw_size + t_kw
                off = t_kh * wp + t_kw                           # static lane offset
                slab_ref[t * cin:(t + 1) * cin,
                         b * l_img:(b + 1) * l_img] = xb[:, off:off + l_img]

    # One fused MXU matmul over the full KH*KW*Cin contraction and the whole
    # batch (N*L_img lanes, a multiple of 128), f32 accumulate, bias folded in.
    acc = jnp.dot(w_ref[...], slab_ref[...],
                  preferred_element_type=jnp.float32) + b_ref[...]

    for b in range(n):                                           # 128-aligned lane slices
        o_ref[b] = acc[:, b * l_img:(b + 1) * l_img].astype(o_ref.dtype)


def _prepare_params(weight_oihw, bias, x_dtype):
    """Weight/bias massaging.  Hoist/precompute once if the op is called repeatedly."""
    cout, cin, kh, kw = weight_oihw.shape
    # (Cout, Cin, KH, KW) -> (Cout, KH*KW*Cin), column order (kh, kw, cin),
    # matching the slab row order built in the kernel.
    w2d = jnp.transpose(weight_oihw, (0, 2, 3, 1)).reshape(cout, kh * kw * cin)
    w2d = w2d.astype(jnp.bfloat16)
    b = bias if bias is not None else jnp.zeros((cout,), x_dtype)
    b2d = b.astype(jnp.float32).reshape(cout, 1)
    return w2d, b2d


def conv2d_static_same_padding(x_nchw, weight_oihw, bias, *, kernel_size, stride=1):
    """Forward pass of Conv2dStaticSamePadding: (N, Cin, H, W) -> (N, Cout, Ho, Wo).

    Padding rule matches the torch forward literally (pad 1 iff k==3, else 0);
    this is NOT general keras-style 'same' padding for other kernel sizes.
    """
    if isinstance(kernel_size, int):
        kernel_size = (kernel_size, kernel_size)
    if isinstance(stride, int):
        stride = (stride, stride)
    assert stride == (1, 1), "only the module-default stride=1 path is implemented"
    # TODO(synk): stride>1, groups>1 and dilation>1 paths of nn.Conv2d are not implemented.

    kh_k, kw_k = kernel_size
    pad = 1 if kh_k == 3 else 0                  # literal torch-forward behaviour

    n, cin, h, w = x_nchw.shape
    cout = weight_oihw.shape[0]
    hp, wp = h + 2 * pad, w + 2 * pad
    h_out = hp - kh_k + 1
    w_out = wp - kw_k + 1
    k_flat = kh_k * kw_k * cin

    # Lane-dense output: per-image output lane stride rounded to a 128 multiple.
    l_valid = h_out * wp
    l_img = _round_up(l_valid, 128)
    # Largest tap lane shift; pad H with extra bottom rows so every tap's
    # l_img-wide lane window stays inside the per-image flat buffer.  This folds
    # the old (KW-1) flat-axis pad into the single spatial pad below.
    max_off = (kh_k - 1) * wp + (kw_k - 1)
    hp2 = -(-(l_img + max_off) // wp)            # cdiv
    extra_rows = hp2 - hp
    l_in = hp2 * wp

    # --- wrapper glue: ONE fused pad+bf16-cast over the input, free reshape ---
    # TODO(synk): the zero pad could be moved fully inside the kernel by DMAing
    # the raw (Cin,H,W) block into a pre-zeroed VMEM scratch, but the (H,W)->lane
    # flattening would then need an in-kernel relayout; kept as one XLA op.
    x_pad = jnp.pad(x_nchw.astype(jnp.bfloat16),
                    ((0, 0), (0, 0), (pad, pad + extra_rows), (pad, pad)))
    x_flat = x_pad.reshape(n, cin, l_in)         # contiguous -> free reshape

    w2d, b2d = _prepare_params(weight_oihw, bias, x_nchw.dtype)

    kernel = functools.partial(
        _conv_same_pad_kernel, n=n, cin=cin, kh_size=kh_k, kw_size=kw_k,
        wp=wp, l_img=l_img)

    flops = 2 * cout * k_flat * n * l_img
    bytes_accessed = (x_flat.size * 2 + w2d.size * 2 + b2d.size * 4
                      + n * cout * l_img * 4)

    out_flat = pl.pallas_call(
        kernel,
        out_shape=jax.ShapeDtypeStruct((n, cout, l_img), x_nchw.dtype),
        grid_spec=pltpu.PrefetchScalarGridSpec(
            num_scalar_prefetch=0,
            grid=(1,),                           # whole (tiny) batch in one step
            in_specs=[
                pl.BlockSpec((n, cin, l_in), lambda i: (0, 0, 0)),
                pl.BlockSpec((cout, k_flat), lambda i: (0, 0)),
                pl.BlockSpec((cout, 1), lambda i: (0, 0)),
            ],
            out_specs=pl.BlockSpec((n, cout, l_img), lambda i: (0, 0, 0)),
            scratch_shapes=[pltpu.VMEM((k_flat, n * l_img), jnp.bfloat16)],
        ),
        compiler_params=pltpu.CompilerParams(
            dimension_semantics=("arbitrary",)),
        cost_estimate=pl.CostEstimate(flops=flops, transcendentals=0,
                                      bytes_accessed=bytes_accessed),
    )(x_flat, w2d, b2d)

    # Valid-column extraction (single small fused slice+reshape+slice copy):
    # flat output rows have stride Wp; keep the first Wo columns of each.
    out = out_flat[:, :, :l_valid].reshape(n, cout, h_out, wp)[:, :, :, :w_out]
    return out


if __name__ == "__main__":
    # Module config consistent with the forward: in=4, out=8, k=3, stride=1, bias=True.
    N, CIN, H, W = 2, 4, 16, 16
    COUT, K = 8, 3

    key = jax.random.PRNGKey(0)
    kx, kw_, kb = jax.random.split(key, 3)
    x = jax.random.normal(kx, (N, CIN, H, W), dtype=jnp.float32)
    fan_in = CIN * K * K
    weight = jax.random.uniform(kw_, (COUT, CIN, K, K), jnp.float32,
                                minval=-1.0, maxval=1.0) / jnp.sqrt(fan_in)
    bias = jax.random.uniform(kb, (COUT,), jnp.float32, minval=-0.1, maxval=0.1)

    out = conv2d_static_same_padding(x, weight, bias, kernel_size=K, stride=1)
    out = jax.block_until_ready(out)

    # Reference: XLA conv with explicit pad=1 (same semantics as F.pad + Conv2d).
    ref = lax.conv_general_dilated(
        x, weight, window_strides=(1, 1), padding=((1, 1), (1, 1)),
        dimension_numbers=("NCHW", "OIHW", "NCHW")) + bias[None, :, None, None]

    assert out.shape == (N, COUT, H, W), out.shape
    # Inputs/weights are cast to bf16 inside the wrapper (f32 accumulate), so the
    # comparison against the pure-f32 reference uses a loosened tolerance.
    assert jnp.allclose(out, ref, atol=5e-2, rtol=5e-2), float(jnp.max(jnp.abs(out - ref)))
    print("KERNEL_OK")
</pallas_src>

<mosaic_0001>
module attributes {stable_mosaic.version = 11 : i64} {
  func.func @_conv_same_pad_kernel(%arg0: i32, %arg1: memref<2x4x432xbf16, #tpu.memory_space<vmem>>, %arg2: memref<8x36xbf16, #tpu.memory_space<vmem>>, %arg3: memref<8x1xf32, #tpu.memory_space<vmem>>, %arg4: memref<2x8x384xf32, #tpu.memory_space<vmem>>, %arg5: memref<36x768xbf16, #tpu.memory_space<vmem>>) attributes {dimension_semantics = [#tpu.dimension_semantics<arbitrary>], iteration_bounds = array<i64: 1>, scalar_prefetch = 0 : i64, scratch_operands = 1 : i64, tpu.core_type = #tpu.core_type<tc>, window_params = [{pipeline_mode = #tpu.pipeline_mode<synchronous>, transform_indices = @transform_0, window_bounds = array<i64: 2, 4, 432>}, {pipeline_mode = #tpu.pipeline_mode<synchronous>, transform_indices = @transform_1, window_bounds = array<i64: 8, 36>}, {pipeline_mode = #tpu.pipeline_mode<synchronous>, transform_indices = @transform_2, window_bounds = array<i64: 8, 1>}, {pipeline_mode = #tpu.pipeline_mode<synchronous>, transform_indices = @transform_3, window_bounds = array<i64: 2, 8, 384>}]} {
    %c0 = arith.constant 0 : index
    %c0_0 = arith.constant 0 : index
    %c0_1 = arith.constant 0 : index
    %0 = vector.load %arg1[%c0, %c0_0, %c0_1] : memref<2x4x432xbf16, #tpu.memory_space<vmem>>, vector<1x4x432xbf16>
    %1 = vector.shape_cast %0 : vector<1x4x432xbf16> to vector<4x432xbf16>
    %2 = vector.extract_strided_slice %1 {offsets = [0, 0], sizes = [4, 384], strides = [1, 1]} : vector<4x432xbf16> to vector<4x384xbf16>
    %c0_2 = arith.constant 0 : index
    %c0_3 = arith.constant 0 : index
    %3 = vector.load %arg5[%c0_2, %c0_3] : memref<36x768xbf16, #tpu.memory_space<vmem>>, vector<4x384xbf16>
    tpu.vector_store %arg5[%c0_2, %c0_3], %2 {strides = array<i32>} : memref<36x768xbf16, #tpu.memory_space<vmem>>, vector<4x384xbf16>,
    %4 = vector.extract_strided_slice %1 {offsets = [0, 1], sizes = [4, 384], strides = [1, 1]} : vector<4x432xbf16> to vector<4x384xbf16>
    %c4 = arith.constant 4 : index
    %c0_4 = arith.constant 0 : index
    %5 = vector.load %arg5[%c4, %c0_4] : memref<36x768xbf16, #tpu.memory_space<vmem>>, vector<4x384xbf16>
    tpu.vector_store %arg5[%c4, %c0_4], %4 {strides = array<i32>} : memref<36x768xbf16, #tpu.memory_space<vmem>>, vector<4x384xbf16>,
    %6 = vector.extract_strided_slice %1 {offsets = [0, 2], sizes = [4, 384], strides = [1, 1]} : vector<4x432xbf16> to vector<4x384xbf16>
    %c8 = arith.constant 8 : index
    %c0_5 = arith.constant 0 : index
    %7 = vector.load %arg5[%c8, %c0_5] : memref<36x768xbf16, #tpu.memory_space<vmem>>, vector<4x384xbf16>
    tpu.vector_store %arg5[%c8, %c0_5], %6 {strides = array<i32>} : memref<36x768xbf16, #tpu.memory_space<vmem>>, vector<4x384xbf16>,
    %8 = vector.extract_strided_slice %1 {offsets = [0, 18], sizes = [4, 384], strides = [1, 1]} : vector<4x432xbf16> to vector<4x384xbf16>
    %c12 = arith.constant 12 : index
    %c0_6 = arith.constant 0 : index
    %9 = vector.load %arg5[%c12, %c0_6] : memref<36x768xbf16, #tpu.memory_space<vmem>>, vector<4x384xbf16>
    tpu.vector_store %arg5[%c12, %c0_6], %8 {strides = array<i32>} : memref<36x768xbf16, #tpu.memory_space<vmem>>, vector<4x384xbf16>,
    %10 = vector.extract_strided_slice %1 {offsets = [0, 19], sizes = [4, 384], strides = [1, 1]} : vector<4x432xbf16> to vector<4x384xbf16>
    %c16 = arith.constant 16 : index
    %c0_7 = arith.constant 0 : index
    %11 = vector.load %arg5[%c16, %c0_7] : memref<36x768xbf16, #tpu.memory_space<vmem>>, vector<4x384xbf16>
    tpu.vector_store %arg5[%c16, %c0_7], %10 {strides = array<i32>} : memref<36x768xbf16, #tpu.memory_space<vmem>>, vector<4x384xbf16>,
    %12 = vector.extract_strided_slice %1 {offsets = [0, 20], sizes = [4, 384], strides = [1, 1]} : vector<4x432xbf16> to vector<4x384xbf16>
    %c20 = arith.constant 20 : index
    %c0_8 = arith.constant 0 : index
    %13 = vector.load %arg5[%c20, %c0_8] : memref<36x768xbf16, #tpu.memory_space<vmem>>, vector<4x384xbf16>
    tpu.vector_store %arg5[%c20, %c0_8], %12 {strides = array<i32>} : memref<36x768xbf16, #tpu.memory_space<vmem>>, vector<4x384xbf16>,
    %14 = vector.extract_strided_slice %1 {offsets = [0, 36], sizes = [4, 384], strides = [1, 1]} : vector<4x432xbf16> to vector<4x384xbf16>
    %c24 = arith.constant 24 : index
    %c0_9 = arith.constant 0 : index
    %15 = vector.load %arg5[%c24, %c0_9] : memref<36x768xbf16, #tpu.memory_space<vmem>>, vector<4x384xbf16>
    tpu.vector_store %arg5[%c24, %c0_9], %14 {strides = array<i32>} : memref<36x768xbf16, #tpu.memory_space<vmem>>, vector<4x384xbf16>,
    %16 = vector.extract_strided_slice %1 {offsets = [0, 37], sizes = [4, 384], strides = [1, 1]} : vector<4x432xbf16> to vector<4x384xbf16>
    %c28 = arith.constant 28 : index
    %c0_10 = arith.constant 0 : index
    %17 = vector.load %arg5[%c28, %c0_10] : memref<36x768xbf16, #tpu.memory_space<vmem>>, vector<4x384xbf16>
    tpu.vector_store %arg5[%c28, %c0_10], %16 {strides = array<i32>} : memref<36x768xbf16, #tpu.memory_space<vmem>>, vector<4x384xbf16>,
    %18 = vector.extract_strided_slice %1 {offsets = [0, 38], sizes = [4, 384], strides = [1, 1]} : vector<4x432xbf16> to vector<4x384xbf16>
    %c32 = arith.constant 32 : index
    %c0_11 = arith.constant 0 : index
    %19 = vector.load %arg5[%c32, %c0_11] : memref<36x768xbf16, #tpu.memory_space<vmem>>, vector<4x384xbf16>
    tpu.vector_store %arg5[%c32, %c0_11], %18 {strides = array<i32>} : memref<36x768xbf16, #tpu.memory_space<vmem>>, vector<4x384xbf16>,
    %c1 = arith.constant 1 : index
    %c0_12 = arith.constant 0 : index
    %c0_13 = arith.constant 0 : index
    %20 = vector.load %arg1[%c1, %c0_12, %c0_13] : memref<2x4x432xbf16, #tpu.memory_space<vmem>>, vector<1x4x432xbf16>
    %21 = vector.shape_cast %20 : vector<1x4x432xbf16> to vector<4x432xbf16>
    %22 = vector.extract_strided_slice %21 {offsets = [0, 0], sizes = [4, 384], strides = [1, 1]} : vector<4x432xbf16> to vector<4x384xbf16>
    %c0_14 = arith.constant 0 : index
    %c384 = arith.constant 384 : index
    %23 = vector.load %arg5[%c0_14, %c384] : memref<36x768xbf16, #tpu.memory_space<vmem>>, vector<4x384xbf16>
    tpu.vector_store %arg5[%c0_14, %c384], %22 {strides = array<i32>} : memref<36x768xbf16, #tpu.memory_space<vmem>>, vector<4x384xbf16>,
    %24 = vector.extract_strided_slice %21 {offsets = [0, 1], sizes = [4, 384], strides = [1, 1]} : vector<4x432xbf16> to vector<4x384xbf16>
    %c4_15 = arith.constant 4 : index
    %c384_16 = arith.constant 384 : index
    %25 = vector.load %arg5[%c4_15, %c384_16] : memref<36x768xbf16, #tpu.memory_space<vmem>>, vector<4x384xbf16>
    tpu.vector_store %arg5[%c4_15, %c384_16], %24 {strides = array<i32>} : memref<36x768xbf16, #tpu.memory_space<vmem>>, vector<4x384xbf16>,
    %26 = vector.extract_strided_slice %21 {offsets = [0, 2], sizes = [4, 384], strides = [1, 1]} : vector<4x432xbf16> to vector<4x384xbf16>
    %c8_17 = arith.constant 8 : index
    %c384_18 = arith.constant 384 : index
    %27 = vector.load %arg5[%c8_17, %c384_18] : memref<36x768xbf16, #tpu.memory_space<vmem>>, vector<4x384xbf16>
    tpu.vector_store %arg5[%c8_17, %c384_18], %26 {strides = array<i32>} : memref<36x768xbf16, #tpu.memory_space<vmem>>, vector<4x384xbf16>,
    %28 = vector.extract_strided_slice %21 {offsets = [0, 18], sizes = [4, 384], strides = [1, 1]} : vector<4x432xbf16> to vector<4x384xbf16>
    %c12_19 = arith.constant 12 : index
    %c384_20 = arith.constant 384 : index
    %29 = vector.load %arg5[%c12_19, %c384_20] : memref<36x768xbf16, #tpu.memory_space<vmem>>, vector<4x384xbf16>
    tpu.vector_store %arg5[%c12_19, %c384_20], %28 {strides = array<i32>} : memref<36x768xbf16, #tpu.memory_space<vmem>>, vector<4x384xbf16>,
    %30 = vector.extract_strided_slice %21 {offsets = [0, 19], sizes = [4, 384], strides = [1, 1]} : vector<4x432xbf16> to vector<4x384xbf16>
    %c16_21 = arith.constant 16 : index
    %c384_22 = arith.constant 384 : index
    %31 = vector.load %arg5[%c16_21, %c384_22] : memref<36x768xbf16, #tpu.memory_space<vmem>>, vector<4x384xbf16>
    tpu.vector_store %arg5[%c16_21, %c384_22], %30 {strides = array<i32>} : memref<36x768xbf16, #tpu.memory_space<vmem>>, vector<4x384xbf16>,
    %32 = vector.extract_strided_slice %21 {offsets = [0, 20], sizes = [4, 384], strides = [1, 1]} : vector<4x432xbf16> to vector<4x384xbf16>
    %c20_23 = arith.constant 20 : index
    %c384_24 = arith.constant 384 : index
    %33 = vector.load %arg5[%c20_23, %c384_24] : memref<36x768xbf16, #tpu.memory_space<vmem>>, vector<4x384xbf16>
    tpu.vector_store %arg5[%c20_23, %c384_24], %32 {strides = array<i32>} : memref<36x768xbf16, #tpu.memory_space<vmem>>, vector<4x384xbf16>,
    %34 = vector.extract_strided_slice %21 {offsets = [0, 36], sizes = [4, 384], strides = [1, 1]} : vector<4x432xbf16> to vector<4x384xbf16>
    %c24_25 = arith.constant 24 : index
    %c384_26 = arith.constant 384 : index
    %35 = vector.load %arg5[%c24_25, %c384_26] : memref<36x768xbf16, #tpu.memory_space<vmem>>, vector<4x384xbf16>
    tpu.vector_store %arg5[%c24_25, %c384_26], %34 {strides = array<i32>} : memref<36x768xbf16, #tpu.memory_space<vmem>>, vector<4x384xbf16>,
    %36 = vector.extract_strided_slice %21 {offsets = [0, 37], sizes = [4, 384], strides = [1, 1]} : vector<4x432xbf16> to vector<4x384xbf16>
    %c28_27 = arith.constant 28 : index
    %c384_28 = arith.constant 384 : index
    %37 = vector.load %arg5[%c28_27, %c384_28] : memref<36x768xbf16, #tpu.memory_space<vmem>>, vector<4x384xbf16>
    tpu.vector_store %arg5[%c28_27, %c384_28], %36 {strides = array<i32>} : memref<36x768xbf16, #tpu.memory_space<vmem>>, vector<4x384xbf16>,
    %38 = vector.extract_strided_slice %21 {offsets = [0, 38], sizes = [4, 384], strides = [1, 1]} : vector<4x432xbf16> to vector<4x384xbf16>
    %c32_29 = arith.constant 32 : index
    %c384_30 = arith.constant 384 : index
    %39 = vector.load %arg5[%c32_29, %c384_30] : memref<36x768xbf16, #tpu.memory_space<vmem>>, vector<4x384xbf16>
    tpu.vector_store %arg5[%c32_29, %c384_30], %38 {strides = array<i32>} : memref<36x768xbf16, #tpu.memory_space<vmem>>, vector<4x384xbf16>,
    %c0_31 = arith.constant 0 : index
    %c0_32 = arith.constant 0 : index
    %40 = vector.load %arg2[%c0_31, %c0_32] : memref<8x36xbf16, #tpu.memory_space<vmem>>, vector<8x36xbf16>
    %c0_33 = arith.constant 0 : index
    %c0_34 = arith.constant 0 : index
    %41 = vector.load %arg5[%c0_33, %c0_34] : memref<36x768xbf16, #tpu.memory_space<vmem>>, vector<36x768xbf16>
    %cst = arith.constant dense<0.000000e+00> : vector<8x768xf32>
    %42 = tpu.matmul %40, %41, %cst {dimension_numbers = #tpu.dot_dimension_numbers<[1], [0], [0], [1], [0, 0, 1, 1], [], []>} : vector<8x36xbf16>, vector<36x768xbf16>, vector<8x768xf32> -> vector<8x768xf32>
    %c0_35 = arith.constant 0 : index
    %c0_36 = arith.constant 0 : index
    %43 = vector.load %arg3[%c0_35, %c0_36] : memref<8x1xf32, #tpu.memory_space<vmem>>, vector<8x1xf32>
    %44 = vector.broadcast %43 : vector<8x1xf32> to vector<8x768xf32>
    %45 = arith.addf %42, %44 : vector<8x768xf32>
    %46 = vector.extract_strided_slice %45 {offsets = [0, 0], sizes = [8, 384], strides = [1, 1]} : vector<8x768xf32> to vector<8x384xf32>
    %c0_37 = arith.constant 0 : index
    %c0_38 = arith.constant 0 : index
    %c0_39 = arith.constant 0 : index
    %47 = vector.load %arg4[%c0_37, %c0_38, %c0_39] : memref<2x8x384xf32, #tpu.memory_space<vmem>>, vector<1x8x384xf32>
    %48 = vector.shape_cast %47 : vector<1x8x384xf32> to vector<8x384xf32>
    %49 = vector.shape_cast %46 : vector<8x384xf32> to vector<1x8x384xf32>
    tpu.vector_store %arg4[%c0_37, %c0_38, %c0_39], %49 {strides = array<i32>} : memref<2x8x384xf32, #tpu.memory_space<vmem>>, vector<1x8x384xf32>,
    %50 = vector.extract_strided_slice %45 {offsets = [0, 384], sizes = [8, 384], strides = [1, 1]} : vector<8x768xf32> to vector<8x384xf32>
    %c1_40 = arith.constant 1 : index
    %c0_41 = arith.constant 0 : index
    %c0_42 = arith.constant 0 : index
    %51 = vector.load %arg4[%c1_40, %c0_41, %c0_42] : memref<2x8x384xf32, #tpu.memory_space<vmem>>, vector<1x8x384xf32>
    %52 = vector.shape_cast %51 : vector<1x8x384xf32> to vector<8x384xf32>
    %53 = vector.shape_cast %50 : vector<8x384xf32> to vector<1x8x384xf32>
    tpu.vector_store %arg4[%c1_40, %c0_41, %c0_42], %53 {strides = array<i32>} : memref<2x8x384xf32, #tpu.memory_space<vmem>>, vector<1x8x384xf32>,
    return
  }
  func.func @transform_0(%arg0: i32) -> (i32, i32, i32) {
    %c0_i32 = arith.constant 0 : i32
    %c0_i32_0 = arith.constant 0 : i32
    %c0_i32_1 = arith.constant 0 : i32
    %c0_i32_2 = arith.constant 0 : i32
    return %c0_i32, %c0_i32_0, %c0_i32_1 : i32, i32, i32
  }
  func.func @transform_1(%arg0: i32) -> (i32, i32) {
    %c0_i32 = arith.constant 0 : i32
    %c0_i32_0 = arith.constant 0 : i32
    %c0_i32_1 = arith.constant 0 : i32
    return %c0_i32, %c0_i32_0 : i32, i32
  }
  func.func @transform_2(%arg0: i32) -> (i32, i32) {
    %c0_i32 = arith.constant 0 : i32
    %c0_i32_0 = arith.constant 0 : i32
    %c0_i32_1 = arith.constant 0 : i32
    return %c0_i32, %c0_i32_0 : i32, i32
  }
  func.func @transform_3(%arg0: i32) -> (i32, i32, i32) {
    %c0_i32 = arith.constant 0 : i32
    %c0_i32_0 = arith.constant 0 : i32
    %c0_i32_1 = arith.constant 0 : i32
    %c0_i32_2 = arith.constant 0 : i32
    return %c0_i32, %c0_i32_0, %c0_i32_1 : i32, i32, i32
  }
}

</mosaic_0001>

<llo_original>
// kernel: tpu_custom_call.1
$region0: #{tpu_custom_call.1}
  #allocation0 [shape = 'u32[]', space=smem, size = 0x4, offset = 0x4, fixed_abs, tag = 'smem constant byte address 0x4 - core index']
  #allocation1 [shape = 'u32[144,128]{1,0:T(1,128)}', space=vmem, size = 0x12000, scoped, tag = 'internal scratch']
  #allocation2 [shape = 'bf16[36,768]{1,0:T(8,128)(2,1)}', space=vmem, size = 0xf000, scoped, tag = 'scratch operand']
  %s0 = inlined_call_operand.hbm [shape: bf16[2,4,432], index: 0, kind: input, shape index: {}]
  %s1 = inlined_call_operand.vmem [shape: bf16[8,36], index: 1, kind: input, shape index: {}]
  %s2 = inlined_call_operand.vmem [shape: f32[8,1], index: 2, kind: input, shape index: {}]
  %s3 = inlined_call_operand.hbm [shape: f32[2,8,384], index: 3, kind: output, shape index: {}]
  %s4 = sld [smem:[#allocation0]]
  $region26: #{tpu_custom_call.1} parent=0
    _
  %s6 = ssub.s32 1, %s4
  %s7 = scalar_select 0, %s6, %s4
  $region1: #{tpu_custom_call.1} parent=0
    #allocation3 [shape = 'u8[8192]{0}', space=vmem, size = 0x2000, scoped, tag = 'input window, operand 0, single buffered']
    #allocation4 [shape = 's32[1]{0}', space=sflag, size = 0x4, scoped, tag = 'scoped memory for tpu_custom_call.1']
    #allocation5 [shape = 's32[1]{0}', space=sflag, size = 0x4, scoped, tag = 'scoped memory for tpu_custom_call.1']
    #allocation6 [shape = 'u8[24576]{0}', space=vmem, size = 0x6000, scoped, tag = 'output window, operand 0, single buffered']
    %8 = vsyncpa [#allocation4], 0
    %9 = vsyncpa [#allocation5], 0
    // Predicated region
    $region2: #{tpu_custom_call.1} parent=1 // pred_check
      _
    $region3: #{tpu_custom_call.1} parent=1 // pred_check_branch
      %11 = sbr.rel (0) target = $region5
    $region4: #{tpu_custom_call.1} parent=1 // pred_region
      %s13 = ssub.s32 256, 256
      %14 = vsyncadd [#allocation4], %s13
      %s15 = sshll.u32 [#allocation3], 4
      %s16 = int_to_ptr.vmem [resolvable:$true] %s15
      %21 = dma.hbm_to_vmem [thread:$0]  %s0, 256, %s16, [#allocation4], 128, 128, 8
    $region5: #{tpu_custom_call.1} parent=1 // pred_fallthru
      _
    // Predicated region
    $region6: #{tpu_custom_call.1} parent=1 // pred_check
      _
    $region7: #{tpu_custom_call.1} parent=1 // pred_check_branch
      %23 = sbr.rel (0) target = $region9
    $region8: #{tpu_custom_call.1} parent=1 // pred_region
      _
    $region9: #{tpu_custom_call.1} parent=1 // pred_fallthru
      _
    // Predicated region
    $region10: #{tpu_custom_call.1} parent=1 // pred_check
      _
    $region11: #{tpu_custom_call.1} parent=1 // pred_check_branch
      %25 = sbr.rel (0) target = $region13
    $region12: #{tpu_custom_call.1} parent=1 // pred_region
      _
    $region13: #{tpu_custom_call.1} parent=1 // pred_fallthru
      _
    // Predicated region
    $region14: #{tpu_custom_call.1} parent=1 // pred_check
      _
    $region15: #{tpu_custom_call.1} parent=1 // pred_check_branch
      %27 = sbr.rel (0) target = $region17
    $region16: #{tpu_custom_call.1} parent=1 // pred_region
      %28 = dma.done [#allocation4], 256
    $region17: #{tpu_custom_call.1} parent=1 // pred_fallthru
      _
    %v30 = vld [vmem:[#allocation3] sm:$0xff]
    %v32 = vcombine.high %v30, %v30
    %v34 = vunpack.c.l.s4 1983009808
    %v35 = vunpack.c.0.s8 %v34
    %v36 = vlaneseq
    %v37 = vshrl.u32 %v36, 7
    %v38 = vsub.s32 %v35, %v37
    %v39 = vrot.slane %v30, %v38
    %v41 = vunpack.c.l.s4 1983009808
    %v42 = vunpack.c.0.s8 %v41
    %v43 = vlaneseq
    %v44 = vshrl.u32 %v43, 7
    %v45 = vsub.s32 %v42, %v44
    %v46 = vrot.slane %v32, %v45
    %49 = vst [vmem:[#allocation2] sm:$0x33] %v39
    %50 = vst [vmem:[#allocation2 + $0x8] sm:$0x3] %v46
    %v51 = vcombine.low %v30, %v30
    %v53 = vunpack.c.l.s4 1983009808
    %v54 = vunpack.c.0.s8 %v53
    %v55 = vlaneseq
    %v56 = vshrl.u32 %v55, 7
    %v57 = vsub.s32 %v54, %v56
    %v58 = vrot.slane %v51, %v57
    %59 = vrot.lane.b32.xlu0 %v58, 127
    %v60 = vpop.permute.xlu0 %59
    %61 = vrot.lane.b32.xlu0 %v39, 127
    %v62 = vpop.permute.xlu0 %61
    %v63 = vrot.slane %v60, 4
    %v64 = vrot.slane %v62, 4
    %vm65 = vcmask 1043456
    %v66 = vsel %vm65, %v63, %v64
    %vm67 = vcmask 1039360
    %v68 = vsel %vm67, %v60, %v66
    %v69 = vsel %vm67, %v62, %v64
    %72 = vst [vmem:[#allocation2] sm:$0xcc] %v68
    %73 = vst [vmem:[#allocation2 + $0x8] sm:$0xc] %v69
    %74 = vrot.lane.b32.xlu0 %v39, 126
    %v75 = vpop.permute.xlu0 %74
    %76 = vrot.lane.b32.xlu0 %v46, 126
    %v77 = vpop.permute.xlu0 %76
    %v78 = vrot.slane %v75, 4
    %v79 = vrot.slane %v77, 4
    %v80 = vsel %vm65, %v78, %v79
    %vm81 = vcmask 1031168
    %v82 = vsel %vm81, %v75, %v80
    %v83 = vsel %vm81, %v77, %v79
    %86 = vst [vmem:[#allocation2 + $0x18] sm:$0x33] %v82
    %87 = vst [vmem:[#allocation2 + $0x20] sm:$0x3] %v83
    %88 = vrot.lane.b32.xlu0 %v58, 110
    %v89 = vpop.permute.xlu0 %88
    %90 = vrot.lane.b32.xlu0 %v39, 110
    %v91 = vpop.permute.xlu0 %90
    %v92 = vrot.slane %v89, 4
    %v93 = vrot.slane %v91, 4
    %v94 = vsel %vm65, %v92, %v93
    %vm95 = vcmask 900096
    %v96 = vsel %vm95, %v89, %v94
    %v97 = vsel %vm95, %v91, %v93
    %100 = vst [vmem:[#allocation2 + $0x18] sm:$0xcc] %v96
    %101 = vst [vmem:[#allocation2 + $0x20] sm:$0xc] %v97
    %102 = vrot.lane.b32.xlu0 %v39, 109
    %v103 = vpop.permute.xlu0 %102
    %104 = vrot.lane.b32.xlu0 %v46, 109
    %v105 = vpop.permute.xlu0 %104
    %v106 = vrot.slane %v103, 4
    %v107 = vrot.slane %v105, 4
    %v108 = vsel %vm65, %v106, %v107
    %vm109 = vcmask 891904
    %v110 = vsel %vm109, %v103, %v108
    %v111 = vsel %vm109, %v105, %v107
    %114 = vst [vmem:[#allocation2 + $0x30] sm:$0x33] %v110
    %115 = vst [vmem:[#allocation2 + $0x38] sm:$0x3] %v111
    %116 = vrot.lane.b32.xlu0 %v58, 108
    %v117 = vpop.permute.xlu0 %116
    %118 = vrot.lane.b32.xlu0 %v39, 108
    %v119 = vpop.permute.xlu0 %118
    %v120 = vrot.slane %v117, 4
    %v121 = vrot.slane %v119, 4
    %v122 = vsel %vm65, %v120, %v121
    %vm123 = vcmask 883712
    %v124 = vsel %vm123, %v117, %v122
    %v125 = vsel %vm123, %v119, %v121
    %128 = vst [vmem:[#allocation2 + $0x30] sm:$0xcc] %v124
    %129 = vst [vmem:[#allocation2 + $0x38] sm:$0xc] %v125
    %130 = vrot.lane.b32.xlu0 %v39, 92
    %v131 = vpop.permute.xlu0 %130
    %132 = vrot.lane.b32.xlu0 %v46, 92
    %v133 = vpop.permute.xlu0 %132
    %v134 = vrot.slane %v131, 4
    %v135 = vrot.slane %v133, 4
    %v136 = vsel %vm65, %v134, %v135
    %vm137 = vcmask 752640
    %v138 = vsel %vm137, %v131, %v136
    %v139 = vsel %vm137, %v133, %v135
    %142 = vst [vmem:[#allocation2 + $0x48] sm:$0x33] %v138
    %143 = vst [vmem:[#allocation2 + $0x50] sm:$0x3] %v139
    %144 = vrot.lane.b32.xlu0 %v58, 91
    %v145 = vpop.permute.xlu0 %144
    %146 = vrot.lane.b32.xlu0 %v39, 91
    %v147 = vpop.permute.xlu0 %146
    %v148 = vrot.slane %v145, 4
    %v149 = vrot.slane %v147, 4
    %v150 = vsel %vm65, %v148, %v149
    %vm151 = vcmask 744448
    %v152 = vsel %vm151, %v145, %v150
    %v153 = vsel %vm151, %v147, %v149
    %156 = vst [vmem:[#allocation2 + $0x48] sm:$0xcc] %v152
    %157 = vst [vmem:[#allocation2 + $0x50] sm:$0xc] %v153
    %158 = vrot.lane.b32.xlu0 %v39, 90
    %v159 = vpop.permute.xlu0 %158
    %160 = vrot.lane.b32.xlu0 %v46, 90
    %v161 = vpop.permute.xlu0 %160
    %v162 = vrot.slane %v159, 4
    %v163 = vrot.slane %v161, 4
    %v164 = vsel %vm65, %v162, %v163
    %vm165 = vcmask 736256
    %v166 = vsel %vm165, %v159, %v164
    %v167 = vsel %vm165, %v161, %v163
    %170 = vst [vmem:[#allocation2 + $0x60] sm:$0x33] %v166
    %171 = vst [vmem:[#allocation2 + $0x68] sm:$0x3] %v167
    %s172 = scalar_lea.vmem [#allocation3], 8
    %v173 = vld [vmem:[%s172] sm:$0xff]
    %v175 = vcombine.high %v173, %v173
    %v177 = vunpack.c.l.s4 1983009808
    %v178 = vunpack.c.0.s8 %v177
    %v179 = vlaneseq
    %v180 = vshrl.u32 %v179, 7
    %v181 = vsub.s32 %v178, %v180
    %v182 = vrot.slane %v173, %v181
    %v184 = vunpack.c.l.s4 1983009808
    %v185 = vunpack.c.0.s8 %v184
    %v186 = vlaneseq
    %v187 = vshrl.u32 %v186, 7
    %v188 = vsub.s32 %v185, %v187
    %v189 = vrot.slane %v175, %v188
    %192 = vst [vmem:[#allocation2 + $0xc] sm:$0x33] %v182
    %193 = vst [vmem:[#allocation2 + $0x14] sm:$0x3] %v189
    %v194 = vcombine.low %v173, %v173
    %v196 = vunpack.c.l.s4 1983009808
    %v197 = vunpack.c.0.s8 %v196
    %v198 = vlaneseq
    %v199 = vshrl.u32 %v198, 7
    %v200 = vsub.s32 %v197, %v199
    %v201 = vrot.slane %v194, %v200
    %202 = vrot.lane.b32.xlu0 %v201, 127
    %v203 = vpop.permute.xlu0 %202
    %204 = vrot.lane.b32.xlu0 %v182, 127
    %v205 = vpop.permute.xlu0 %204
    %v206 = vrot.slane %v203, 4
    %v207 = vrot.slane %v205, 4
    %v208 = vsel %vm65, %v206, %v207
    %v209 = vsel %vm67, %v203, %v208
    %v210 = vsel %vm67, %v205, %v207
    %213 = vst [vmem:[#allocation2 + $0xc] sm:$0xcc] %v209
    %214 = vst [vmem:[#allocation2 + $0x14] sm:$0xc] %v210
    %215 = vrot.lane.b32.xlu0 %v182, 126
    %v216 = vpop.permute.xlu0 %215
    %217 = vrot.lane.b32.xlu0 %v189, 126
    %v218 = vpop.permute.xlu0 %217
    %v219 = vrot.slane %v216, 4
    %v220 = vrot.slane %v218, 4
    %v221 = vsel %vm65, %v219, %v220
    %v222 = vsel %vm81, %v216, %v221
    %v223 = vsel %vm81, %v218, %v220
    %226 = vst [vmem:[#allocation2 + $0x24] sm:$0x33] %v222
    %227 = vst [vmem:[#allocation2 + $0x2c] sm:$0x3] %v223
    %228 = vrot.lane.b32.xlu0 %v201, 110
    %v229 = vpop.permute.xlu0 %228
    %230 = vrot.lane.b32.xlu0 %v182, 110
    %v231 = vpop.permute.xlu0 %230
    %v232 = vrot.slane %v229, 4
    %v233 = vrot.slane %v231, 4
    %v234 = vsel %vm65, %v232, %v233
    %v235 = vsel %vm95, %v229, %v234
    %v236 = vsel %vm95, %v231, %v233
    %239 = vst [vmem:[#allocation2 + $0x24] sm:$0xcc] %v235
    %240 = vst [vmem:[#allocation2 + $0x2c] sm:$0xc] %v236
    %241 = vrot.lane.b32.xlu0 %v182, 109
    %v242 = vpop.permute.xlu0 %241
    %243 = vrot.lane.b32.xlu0 %v189, 109
    %v244 = vpop.permute.xlu0 %243
    %v245 = vrot.slane %v242, 4
    %v246 = vrot.slane %v244, 4
    %v247 = vsel %vm65, %v245, %v246
    %v248 = vsel %vm109, %v242, %v247
    %v249 = vsel %vm109, %v244, %v246
    %252 = vst [vmem:[#allocation2 + $0x3c] sm:$0x33] %v248
    %253 = vst [vmem:[#allocation2 + $0x44] sm:$0x3] %v249
    %254 = vrot.lane.b32.xlu0 %v201, 108
    %v255 = vpop.permute.xlu0 %254
    %256 = vrot.lane.b32.xlu0 %v182, 108
    %v257 = vpop.permute.xlu0 %256
    %v258 = vrot.slane %v255, 4
    %v259 = vrot.slane %v257, 4
    %v260 = vsel %vm65, %v258, %v259
    %v261 = vsel %vm123, %v255, %v260
    %v262 = vsel %vm123, %v257, %v259
    %265 = vst [vmem:[#allocation2 + $0x3c] sm:$0xcc] %v261
    %266 = vst [vmem:[#allocation2 + $0x44] sm:$0xc] %v262
    %267 = vrot.lane.b32.xlu0 %v182, 92
    %v268 = vpop.permute.xlu0 %267
    %269 = vrot.lane.b32.xlu0 %v189, 92
    %v270 = vpop.permute.xlu0 %269
    %v271 = vrot.slane %v268, 4
    %v272 = vrot.slane %v270, 4
    %v273 = vsel %vm65, %v271, %v272
    %v274 = vsel %vm137, %v268, %v273
    %v275 = vsel %vm137, %v270, %v272
    %278 = vst [vmem:[#allocation2 + $0x54] sm:$0x33] %v274
    %279 = vst [vmem:[#allocation2 + $0x5c] sm:$0x3] %v275
    %280 = vrot.lane.b32.xlu0 %v201, 91
    %v281 = vpop.permute.xlu0 %280
    %282 = vrot.lane.b32.xlu0 %v182, 91
    %v283 = vpop.permute.xlu0 %282
    %v284 = vrot.slane %v281, 4
    %v285 = vrot.slane %v283, 4
    %v286 = vsel %vm65, %v284, %v285
    %v287 = vsel %vm151, %v281, %v286
    %v288 = vsel %vm151, %v283, %v285
    %291 = vst [vmem:[#allocation2 + $0x54] sm:$0xcc] %v287
    %292 = vst [vmem:[#allocation2 + $0x5c] sm:$0xc] %v288
    %293 = vrot.lane.b32.xlu0 %v182, 90
    %v294 = vpop.permute.xlu0 %293
    %295 = vrot.lane.b32.xlu0 %v189, 90
    %v296 = vpop.permute.xlu0 %295
    %v297 = vrot.slane %v294, 4
    %v298 = vrot.slane %v296, 4
    %v299 = vsel %vm65, %v297, %v298
    %v300 = vsel %vm165, %v294, %v299
    %v301 = vsel %vm165, %v296, %v298
    %304 = vst [vmem:[#allocation2 + $0x6c] sm:$0x33] %v300
    %305 = vst [vmem:[#allocation2 + $0x74] sm:$0x3] %v301
    %v306 = vld [vmem:[%s1] sm:$0xf]
    %v307 = vld [vmem:[#allocation2] sm:$0xff]
    %v308 = vld [vmem:[#allocation2 + $0x8] sm:$0xff]
    %v309 = vld [vmem:[#allocation2 + $0x10] sm:$0xff]
    %v310 = vld [vmem:[#allocation2 + $0x18] sm:$0xff]
    %v311 = vld [vmem:[#allocation2 + $0x20] sm:$0xff]
    %v312 = vld [vmem:[#allocation2 + $0x28] sm:$0xff]
    %v313 = vld [vmem:[#allocation2 + $0x30] sm:$0xff]
    %v314 = vld [vmem:[#allocation2 + $0x38] sm:$0xff]
    %v315 = vld [vmem:[#allocation2 + $0x40] sm:$0xff]
    %v316 = vld [vmem:[#allocation2 + $0x48] sm:$0xff]
    %v317 = vld [vmem:[#allocation2 + $0x50] sm:$0xff]
    %v318 = vld [vmem:[#allocation2 + $0x58] sm:$0xff]
    %v319 = vld [vmem:[#allocation2 + $0x60] sm:$0x33]
    %v320 = vld [vmem:[#allocation2 + $0x68] sm:$0x33]
    %v321 = vld [vmem:[#allocation2 + $0x70] sm:$0x33]
    %v322 = vld [vmem:[%s2] sm:$0xff]
    %324 = vset.pattern.permute.xlu0 0
    %325 = vperm.xlu0 %324, %v322
    %v326 = vpop.permute.xlu0 %325
    %v343 = vunpack.c.l.b16 %v307
    %v344 = vunpack.c.h.b16 %v307
    %v345 = vunpack.c.l.b16 %v308
    %v346 = vunpack.c.h.b16 %v308
    %v347 = vunpack.c.l.b16 %v309
    %v348 = vunpack.c.h.b16 %v309
    %v349 = vunpack.c.l.b16 %v310
    %v350 = vunpack.c.h.b16 %v310
    %v351 = vunpack.c.l.b16 %v311
    %v352 = vunpack.c.h.b16 %v311
    %v353 = vunpack.c.l.b16 %v312
    %v354 = vunpack.c.h.b16 %v312
    %v355 = vunpack.c.l.b16 %v313
    %v356 = vunpack.c.h.b16 %v313
    %v357 = vunpack.c.l.b16 %v314
    %v358 = vunpack.c.h.b16 %v314
    %v359 = vunpack.c.l.b16 %v315
    %v360 = vunpack.c.h.b16 %v315
    %v361 = vunpack.c.l.b16 %v316
    %v362 = vunpack.c.h.b16 %v316
    %v363 = vunpack.c.l.b16 %v317
    %v364 = vunpack.c.h.b16 %v317
    %v365 = vunpack.c.l.b16 %v318
    %v366 = vunpack.c.h.b16 %v318
    %v367 = vunpack.c.l.b16 %v319
    %v368 = vunpack.c.h.b16 %v319
    %v369 = vunpack.c.l.b16 %v320
    %v370 = vunpack.c.h.b16 %v320
    %v371 = vunpack.c.l.b16 %v321
    %v372 = vunpack.c.h.b16 %v321
    %v373 = vpack.c.b16 %v349, %v343
    %v374 = vpack.c.b16 %v350, %v344
    %v375 = vpack.c.b16 %v351, %v345
    %v376 = vpack.c.b16 %v352, %v346
    %v377 = vpack.c.b16 %v353, %v347
    %v378 = vpack.c.b16 %v354, %v348
    %v379 = vpack.c.b16 %v361, %v355
    %v380 = vpack.c.b16 %v362, %v356
    %v381 = vpack.c.b16 %v363, %v357
    %v382 = vpack.c.b16 %v364, %v358
    %v383 = vpack.c.b16 %v365, %v359
    %v384 = vpack.c.b16 %v366, %v360
    %v385 = vpack.c.b16 %v367, %v367
    %v386 = vpack.c.b16 %v368, %v368
    %v387 = vpack.c.b16 %v369, %v369
    %v388 = vpack.c.b16 %v370, %v370
    %v389 = vpack.c.b16 %v371, %v371
    %v390 = vpack.c.b16 %v372, %v372
    %vm403 = vcmask 293888
    %v405 = vsel %vm403, %v306, 0
    %vm407 = vcmask 1041408
    %v409 = vsel %vm407, %v385, 0
    %v412 = vsel %vm407, %v386, 0
    %v415 = vsel %vm407, %v387, 0
    %v418 = vsel %vm407, %v388, 0
    %v421 = vsel %vm407, %v389, 0
    %v424 = vsel %vm407, %v390, 0
    %426 = vmatprep.subr.bf16.mxu0 0
    %427 = vmatpush1.bf16.msra.mxu0 0
    %428 = vmatprep.subr.bf16.mxu0 0
    %429 = vmatpush1.bf16.msra.mxu0 0
    %430 = vmatprep.subr.bf16.mxu0 0
    %431 = vmatpush1.bf16.msra.mxu0 0
    %432 = vmatprep.subr.bf16.mxu0 0
    %433 = vmatpush1.bf16.msra.mxu0 0
    %434 = vmatprep.subr.bf16.mxu0 0
    %435 = vmatpush1.bf16.msra.mxu0 0
    %436 = vmatprep.subr.bf16.mxu0 %v412
    %437 = vmatpush1.bf16.msra.mxu0 %v409
    %438 = vmatprep.subr.bf16.mxu0 %v380
    %439 = vmatpush1.bf16.msra.mxu0 %v379
    %440 = vmatprep.subr.bf16.mxu0 %v374
    %441 = vmatpush1.bf16.msra.mxu0 %v373
    %442 = vmatprep.subr.bf16.mxu0 0
    %443 = vmatpush2.bf16.msra.mxu0 0
    %444 = vmatprep.subr.bf16.mxu0 0
    %445 = vmatpush2.bf16.msra.mxu0 0
    %446 = vmatprep.subr.bf16.mxu0 0
    %447 = vmatpush2.bf16.msra.mxu0 0
    %448 = vmatprep.subr.bf16.mxu0 0
    %449 = vmatpush2.bf16.msra.mxu0 0
    %450 = vmatprep.subr.bf16.mxu0 0
    %451 = vmatpush2.bf16.msra.mxu0 0
    %452 = vmatprep.subr.bf16.mxu0 0
    %453 = vmatpush2.bf16.msra.mxu0 0
    %454 = vmatprep.subr.bf16.mxu0 0
    %455 = vmatpush2.bf16.msra.mxu0 0
    %456 = vmatprep.subr.bf16.mxu0 0
    %457 = vmatpush2.bf16.msra.mxu0 0
    %458 = vmatprep.mubr.bf16.mxu0 0
    %459 = vmatmul.mubr.bf16.gmra.mxu0 %v405
    %v460 = vpop.f32.mrf.mxu0
    %v461 = vadd.f32 %v326, %v460
    %v462 = vpop.f32.mrf.mxu0
    %v463 = vadd.f32 %v326, %v462
    %v464 = vpop.f32.mrf.mxu0
    %v465 = vpop.f32.mrf.mxu0
    %466 = vdwg.mxu0
    %467 = vmatprep.subr.bf16.mxu0 0
    %468 = vmatpush1.bf16.msra.mxu0 0
    %469 = vmatprep.subr.bf16.mxu0 0
    %470 = vmatpush1.bf16.msra.mxu0 0
    %471 = vmatprep.subr.bf16.mxu0 0
    %472 = vmatpush1.bf16.msra.mxu0 0
    %473 = vmatprep.subr.bf16.mxu0 0
    %474 = vmatpush1.bf16.msra.mxu0 0
    %475 = vmatprep.subr.bf16.mxu0 0
    %476 = vmatpush1.bf16.msra.mxu0 0
    %477 = vmatprep.subr.bf16.mxu0 %v418
    %478 = vmatpush1.bf16.msra.mxu0 %v415
    %479 = vmatprep.subr.bf16.mxu0 %v382
    %480 = vmatpush1.bf16.msra.mxu0 %v381
    %481 = vmatprep.subr.bf16.mxu0 %v376
    %482 = vmatpush1.bf16.msra.mxu0 %v375
    %483 = vmatprep.subr.bf16.mxu0 0
    %484 = vmatpush2.bf16.msra.mxu0 0
    %485 = vmatprep.subr.bf16.mxu0 0
    %486 = vmatpush2.bf16.msra.mxu0 0
    %487 = vmatprep.subr.bf16.mxu0 0
    %488 = vmatpush2.bf16.msra.mxu0 0
    %489 = vmatprep.subr.bf16.mxu0 0
    %490 = vmatpush2.bf16.msra.mxu0 0
    %491 = vmatprep.subr.bf16.mxu0 0
    %492 = vmatpush2.bf16.msra.mxu0 0
    %493 = vmatprep.subr.bf16.mxu0 0
    %494 = vmatpush2.bf16.msra.mxu0 0
    %495 = vmatprep.subr.bf16.mxu0 0
    %496 = vmatpush2.bf16.msra.mxu0 0
    %497 = vmatprep.subr.bf16.mxu0 0
    %498 = vmatpush2.bf16.msra.mxu0 0
    %499 = vmatprep.mubr.bf16.mxu0 0
    %500 = vmatmul.mubr.bf16.gmra.mxu0 %v405
    %v501 = vpop.f32.mrf.mxu0
    %v502 = vadd.f32 %v326, %v501
    %v503 = vpop.f32.mrf.mxu0
    %v504 = vadd.f32 %v326, %v503
    %v505 = vpop.f32.mrf.mxu0
    %v506 = vpop.f32.mrf.mxu0
    %507 = vdwg.mxu0
    %508 = vmatprep.subr.bf16.mxu0 0
    %509 = vmatpush1.bf16.msra.mxu0 0
    %510 = vmatprep.subr.bf16.mxu0 0
    %511 = vmatpush1.bf16.msra.mxu0 0
    %512 = vmatprep.subr.bf16.mxu0 0
    %513 = vmatpush1.bf16.msra.mxu0 0
    %514 = vmatprep.subr.bf16.mxu0 0
    %515 = vmatpush1.bf16.msra.mxu0 0
    %516 = vmatprep.subr.bf16.mxu0 0
    %517 = vmatpush1.bf16.msra.mxu0 0
    %518 = vmatprep.subr.bf16.mxu0 %v424
    %519 = vmatpush1.bf16.msra.mxu0 %v421
    %520 = vmatprep.subr.bf16.mxu0 %v384
    %521 = vmatpush1.bf16.msra.mxu0 %v383
    %522 = vmatprep.subr.bf16.mxu0 %v378
    %523 = vmatpush1.bf16.msra.mxu0 %v377
    %524 = vmatprep.subr.bf16.mxu0 0
    %525 = vmatpush2.bf16.msra.mxu0 0
    %526 = vmatprep.subr.bf16.mxu0 0
    %527 = vmatpush2.bf16.msra.mxu0 0
    %528 = vmatprep.subr.bf16.mxu0 0
    %529 = vmatpush2.bf16.msra.mxu0 0
    %530 = vmatprep.subr.bf16.mxu0 0
    %531 = vmatpush2.bf16.msra.mxu0 0
    %532 = vmatprep.subr.bf16.mxu0 0
    %533 = vmatpush2.bf16.msra.mxu0 0
    %534 = vmatprep.subr.bf16.mxu0 0
    %535 = vmatpush2.bf16.msra.mxu0 0
    %536 = vmatprep.subr.bf16.mxu0 0
    %537 = vmatpush2.bf16.msra.mxu0 0
    %538 = vmatprep.subr.bf16.mxu0 0
    %539 = vmatpush2.bf16.msra.mxu0 0
    %540 = vmatprep.mubr.bf16.mxu0 0
    %541 = vmatmul.mubr.bf16.gmra.mxu0 %v405
    %v542 = vpop.f32.mrf.mxu0
    %v543 = vadd.f32 %v326, %v542
    %v544 = vpop.f32.mrf.mxu0
    %v545 = vadd.f32 %v326, %v544
    %v546 = vpop.f32.mrf.mxu0
    %v547 = vpop.f32.mrf.mxu0
    %548 = vdwg.mxu0
    %549 = vst [vmem:[#allocation6] sm:$0xff] %v461
    %550 = vst [vmem:[#allocation6 + $0x8] sm:$0xff] %v463
    %551 = vst [vmem:[#allocation6 + $0x10] sm:$0xff] %v502
    %s552 = scalar_lea.vmem [#allocation6], 24
    %553 = vst [vmem:[%s552] sm:$0xff] %v504
    %554 = vst [vmem:[%s552 + $0x8] sm:$0xff] %v543
    %555 = vst [vmem:[%s552 + $0x10] sm:$0xff] %v545
    // Predicated region
    $region18: #{tpu_custom_call.1} parent=1 // pred_check
      _
    $region19: #{tpu_custom_call.1} parent=1 // pred_check_branch
      %557 = sbr.rel (0) target = $region21
    $region20: #{tpu_custom_call.1} parent=1 // pred_region
      %s559 = ssub.s32 768, 768
      %560 = vsyncadd [#allocation5], %s559
      %s561 = sshll.u32 [#allocation6], 4
      %s562 = int_to_ptr.vmem [resolvable:$true] %s561
      %567 = dma.vmem_to_hbm [thread:$0]  %s562, 768, %s3, [#allocation5], 384, 384, 24
    $region21: #{tpu_custom_call.1} parent=1 // pred_fallthru
      _
    // Predicated region
    $region22: #{tpu_custom_call.1} parent=1 // pred_check
      _
    $region23: #{tpu_custom_call.1} parent=1 // pred_check_branch
      %569 = sbr.rel (0) target = $region25
    $region24: #{tpu_custom_call.1} parent=1 // pred_region
      %570 = dma.done [#allocation5], 768
    $region25: #{tpu_custom_call.1} parent=1 // pred_fallthru
      _
    %571 = vsyncpa [#allocation4], 1
    %572 = vsyncpa [#allocation5], 1

</llo_original>
